<compile_context>
chip_gen: v7x
topology: tpu7x:2x2x1
jax: 0.10.0
libtpu: 0.0.40
codegen_flags: <defaults>
</compile_context>

<pallas_src>
import jax
import jax.numpy as jnp
from jax.experimental import pallas as pl
from jax.experimental.pallas import tpu as pltpu


_VMEM_LIMIT = 64 * 1024 * 1024  # sized against v7x's 64 MiB physical VMEM


def _pick_tile(dim, target):
    """Largest TPU-friendly tile <= target that evenly divides `dim`
    (falls back to the full dim, which is always a legal block size)."""
    if dim <= target:
        return dim
    for t in (target, 1024, 512, 256, 128, 8):
        if t <= target and dim % t == 0:
            return t
    return dim


# -----------------------------------------------------------------------------
# Generic tiled matmul + bias kernel (used for input and output projections).
# -----------------------------------------------------------------------------
def _matmul_bias_kernel(x_ref, w_ref, b_ref, o_ref):
    acc = jnp.dot(x_ref[...], w_ref[...], preferred_element_type=jnp.float32)
    o_ref[...] = (acc + b_ref[...]).astype(o_ref.dtype)


def matmul_bias(x, w, b, *, out_dtype, tm=256, tn=512):
    """(M, K) @ (K, N) + (1, N), tiled over (M, N); K (= E or H) kept whole."""
    M, K = x.shape
    _, N = w.shape
    bm = _pick_tile(M, tm)
    bn = _pick_tile(N, tn)  # V-tiles sized for v7x's smaller VMEM
    return pl.pallas_call(
        _matmul_bias_kernel,
        out_shape=jax.ShapeDtypeStruct((M, N), out_dtype),
        grid_spec=pltpu.PrefetchScalarGridSpec(
            num_scalar_prefetch=0,
            grid=(M // bm, N // bn),
            in_specs=[
                pl.BlockSpec((bm, K), lambda i, j: (i, 0)),
                pl.BlockSpec((K, bn), lambda i, j: (0, j)),
                pl.BlockSpec((1, bn), lambda i, j: (0, j)),
            ],
            out_specs=pl.BlockSpec((bm, bn), lambda i, j: (i, j)),
        ),
        compiler_params=pltpu.CompilerParams(
            dimension_semantics=("parallel", "parallel"),  # megacore-shardable
            vmem_limit_bytes=_VMEM_LIMIT),
    )(x, w, b)


# -----------------------------------------------------------------------------
# LSTM recurrence kernel: one grid step per batch tile, fori_loop over T.
# Gate ordering follows PyTorch nn.LSTM: [i, f, g, o].
# -----------------------------------------------------------------------------
def _lstm_recurrence_kernel(gx_ref, whh_ref, h_ref):
    """gx_ref: (T, tb, 4H) f32, whh_ref: (H, 4H) bf16, h_ref: (T, tb, H) bf16."""
    T, tb, _ = gx_ref.shape
    H = whh_ref.shape[0]

    def sigmoid(v):  # one EUP transcendental instead of exp + divide
        return 0.5 * (jnp.tanh(0.5 * v) + 1.0)

    def step(t, carry):
        h, c = carry  # f32 (tb, H) kept in registers across steps
        gates = gx_ref[t] + jnp.dot(h.astype(whh_ref.dtype), whh_ref[...],
                                    preferred_element_type=jnp.float32)
        i = sigmoid(gates[:, 0 * H:1 * H])
        f = sigmoid(gates[:, 1 * H:2 * H])
        g = jnp.tanh(gates[:, 2 * H:3 * H])
        o = sigmoid(gates[:, 3 * H:4 * H])
        c_new = f * c + i * g
        h_new = o * jnp.tanh(c_new)
        h_ref[t] = h_new.astype(h_ref.dtype)
        return (h_new, c_new)

    zeros = jnp.zeros((tb, H), jnp.float32)
    jax.lax.fori_loop(0, T, step, (zeros, zeros),
                      unroll=True if T <= 32 else 8)


# -----------------------------------------------------------------------------
# Wrapper: embedding lookup + concat (glue), then the three Pallas stages.
# -----------------------------------------------------------------------------
def decoder_rnn_forward(features, captions, params, *, batch_tile=64):
    """
    features: (B, embed_size) float32
    captions: (B, T_cap)      int32
    returns:  (B, T_cap, vocab_size) float32  -- matches PyTorch forward()
    """
    emb = jnp.take(params["embed"], captions[:, :-1], axis=0)          # (B, T-1, E)
    inputs = jnp.concatenate([features[:, None, :], emb], axis=1)      # (B, T, E)
    B, T, E = inputs.shape
    H = params["w_hh"].shape[0]
    V = params["w_out"].shape[1]

    w_ih = params["w_ih"].astype(jnp.bfloat16)
    w_hh = params["w_hh"].astype(jnp.bfloat16)
    w_out = params["w_out"].astype(jnp.bfloat16)

    # 1) input projection for ALL timesteps as one matmul (hoisted out of the
    #    recurrence). Only the small E-wide activations get transposed.
    x_tm = jnp.transpose(inputs, (1, 0, 2)).astype(jnp.bfloat16)       # (T, B, E)
    gates_x = matmul_bias(x_tm.reshape(T * B, E), w_ih, params["b"],
                          out_dtype=jnp.float32).reshape(T, B, 4 * H)

    # 2) serial LSTM recurrence; batch tiles are independent -> "parallel".
    tb = _pick_tile(B, batch_tile)
    hiddens_tm = pl.pallas_call(
        _lstm_recurrence_kernel,
        out_shape=jax.ShapeDtypeStruct((T, B, H), jnp.bfloat16),
        grid_spec=pltpu.PrefetchScalarGridSpec(
            num_scalar_prefetch=0,
            grid=(B // tb,),
            in_specs=[
                pl.BlockSpec((T, tb, 4 * H), lambda b: (0, b, 0)),
                pl.BlockSpec((H, 4 * H), lambda b: (0, 0)),
            ],
            out_specs=pl.BlockSpec((T, tb, H), lambda b: (0, b, 0)),
        ),
        compiler_params=pltpu.CompilerParams(
            dimension_semantics=("parallel",),
            vmem_limit_bytes=_VMEM_LIMIT),
    )(gates_x, w_hh)

    # 3) output projection hoisted out of the recurrence: one big matmul over
    #    all (B*T) rows, written batch-first directly (logits never transposed).
    hiddens = jnp.transpose(hiddens_tm, (1, 0, 2)).reshape(B * T, H)   # small, H-wide
    logits = matmul_bias(hiddens, w_out, params["b_out"],
                         out_dtype=jnp.float32)                        # (B*T, V)
    return logits.reshape(B, T, V)


# -----------------------------------------------------------------------------
# Pure-JAX reference mirroring the kernel's bf16 matmul / f32 accumulation.
# -----------------------------------------------------------------------------
def decoder_rnn_reference(features, captions, params):
    emb = jnp.take(params["embed"], captions[:, :-1], axis=0)
    inputs = jnp.concatenate([features[:, None, :], emb], axis=1)      # (B, T, E)
    B, T, E = inputs.shape
    H = params["w_hh"].shape[0]

    w_ih = params["w_ih"].astype(jnp.bfloat16)
    w_hh = params["w_hh"].astype(jnp.bfloat16)
    w_out = params["w_out"].astype(jnp.bfloat16)

    x_bf = inputs.astype(jnp.bfloat16).reshape(B * T, E)
    gates_x = (jnp.dot(x_bf, w_ih, preferred_element_type=jnp.float32)
               + params["b"]).reshape(B, T, 4 * H)
    gates_x = jnp.transpose(gates_x, (1, 0, 2))                        # (T, B, 4H)

    def step(carry, g_x):
        h, c = carry
        gates = g_x + jnp.dot(h.astype(jnp.bfloat16), w_hh,
                              preferred_element_type=jnp.float32)
        i = jax.nn.sigmoid(gates[:, 0 * H:1 * H])
        f = jax.nn.sigmoid(gates[:, 1 * H:2 * H])
        g = jnp.tanh(gates[:, 2 * H:3 * H])
        o = jax.nn.sigmoid(gates[:, 3 * H:4 * H])
        c = f * c + i * g
        h = o * jnp.tanh(c)
        return (h, c), h.astype(jnp.bfloat16)

    h0 = jnp.zeros((B, H), jnp.float32)
    (_, _), hs = jax.lax.scan(step, (h0, h0), gates_x)                 # (T, B, H)
    hiddens = jnp.transpose(hs, (1, 0, 2)).reshape(B * T, H)
    logits = (jnp.dot(hiddens, w_out, preferred_element_type=jnp.float32)
              + params["b_out"])
    return logits.reshape(B, T, -1)


# -----------------------------------------------------------------------------
# Deterministic parameter init (shapes from DecoderRNN.__init__, num_layers=1).
# -----------------------------------------------------------------------------
def init_params(key, embed_size, hidden_size, vocab_size):
    ks = jax.random.split(key, 7)
    s = 0.1
    return {
        # nn.Embedding(vocab_size, embed_size)
        "embed": s * jax.random.normal(ks[0], (vocab_size, embed_size), jnp.float32),
        # nn.LSTM: weight_ih_l0 (4H,E), weight_hh_l0 (4H,H) stored transposed
        "w_ih": s * jax.random.normal(ks[1], (embed_size, 4 * hidden_size), jnp.float32),
        "w_hh": s * jax.random.normal(ks[2], (hidden_size, 4 * hidden_size), jnp.float32),
        # bias_ih_l0 + bias_hh_l0 combined, kept 2D
        "b": s * jax.random.normal(ks[3], (1, 4 * hidden_size), jnp.float32),
        # nn.Linear(hidden_size, vocab_size): weight (V,H) stored transposed
        "w_out": s * jax.random.normal(ks[4], (hidden_size, vocab_size), jnp.float32),
        "b_out": s * jax.random.normal(ks[5], (1, vocab_size), jnp.float32),
    }


if __name__ == "__main__":
    # small, forward-consistent shapes
    B, T_CAP = 2, 8
    EMBED, HIDDEN, VOCAB = 32, 32, 64

    key = jax.random.PRNGKey(0)
    k_p, k_f, k_c = jax.random.split(key, 3)

    params = init_params(k_p, EMBED, HIDDEN, VOCAB)
    features = jax.random.normal(k_f, (B, EMBED), jnp.float32)         # CNN features
    captions = jax.random.randint(k_c, (B, T_CAP), 0, VOCAB, jnp.int32)

    out = decoder_rnn_forward(features, captions, params)
    out = jax.block_until_ready(out)

    ref = decoder_rnn_reference(features, captions, params)
    assert out.shape == (B, T_CAP, VOCAB), out.shape
    max_err = float(jnp.max(jnp.abs(out - ref)))
    assert jnp.allclose(out, ref, atol=2e-2, rtol=2e-2), max_err

    # TODO(synk): sample() (greedy autoregressive decode with argmax feedback) is
    # a host-side loop outside forward(); not implemented here.
    print("KERNEL_OK")
</pallas_src>

<mosaic_0001>
module attributes {stable_mosaic.version = 11 : i64} {
  func.func @_matmul_bias_kernel(%arg0: i32, %arg1: i32, %arg2: memref<16x32xbf16, #tpu.memory_space<vmem>>, %arg3: memref<32x128xbf16, #tpu.memory_space<vmem>>, %arg4: memref<1x128xf32, #tpu.memory_space<vmem>>, %arg5: memref<16x128xf32, #tpu.memory_space<vmem>>) attributes {dimension_semantics = [#tpu.dimension_semantics<parallel>, #tpu.dimension_semantics<parallel>], iteration_bounds = array<i64: 1, 1>, scalar_prefetch = 0 : i64, scratch_operands = 0 : i64, tpu.core_type = #tpu.core_type<tc>, window_params = [{transform_indices = @transform_0, window_bounds = array<i64: 16, 32>}, {transform_indices = @transform_1, window_bounds = array<i64: 32, 128>}, {transform_indices = @transform_2, window_bounds = array<i64: 1, 128>}, {transform_indices = @transform_3, window_bounds = array<i64: 16, 128>}]} {
    %c0 = arith.constant 0 : index
    %c0_0 = arith.constant 0 : index
    %0 = vector.load %arg2[%c0, %c0_0] : memref<16x32xbf16, #tpu.memory_space<vmem>>, vector<16x32xbf16>
    %c0_1 = arith.constant 0 : index
    %c0_2 = arith.constant 0 : index
    %1 = vector.load %arg3[%c0_1, %c0_2] : memref<32x128xbf16, #tpu.memory_space<vmem>>, vector<32x128xbf16>
    %cst = arith.constant dense<0.000000e+00> : vector<16x128xf32>
    %2 = tpu.matmul %0, %1, %cst {dimension_numbers = #tpu.dot_dimension_numbers<[1], [0], [0], [1], [0, 0, 1, 1], [], []>} : vector<16x32xbf16>, vector<32x128xbf16>, vector<16x128xf32> -> vector<16x128xf32>
    %c0_3 = arith.constant 0 : index
    %c0_4 = arith.constant 0 : index
    %3 = vector.load %arg4[%c0_3, %c0_4] : memref<1x128xf32, #tpu.memory_space<vmem>>, vector<1x128xf32>
    %4 = vector.broadcast %3 : vector<1x128xf32> to vector<16x128xf32>
    %5 = arith.addf %2, %4 : vector<16x128xf32>
    %c0_5 = arith.constant 0 : index
    %c0_6 = arith.constant 0 : index
    %6 = vector.load %arg5[%c0_5, %c0_6] : memref<16x128xf32, #tpu.memory_space<vmem>>, vector<16x128xf32>
    tpu.vector_store %arg5[%c0_5, %c0_6], %5 {strides = array<i32>} : memref<16x128xf32, #tpu.memory_space<vmem>>, vector<16x128xf32>,
    return
  }
  func.func @transform_0(%arg0: i32, %arg1: i32) -> (i32, i32) {
    %c0_i32 = arith.constant 0 : i32
    %c0_i32_0 = arith.constant 0 : i32
    return %arg0, %c0_i32 : i32, i32
  }
  func.func @transform_1(%arg0: i32, %arg1: i32) -> (i32, i32) {
    %c0_i32 = arith.constant 0 : i32
    %c0_i32_0 = arith.constant 0 : i32
    return %c0_i32, %arg1 : i32, i32
  }
  func.func @transform_2(%arg0: i32, %arg1: i32) -> (i32, i32) {
    %c0_i32 = arith.constant 0 : i32
    %c0_i32_0 = arith.constant 0 : i32
    return %c0_i32, %arg1 : i32, i32
  }
  func.func @transform_3(%arg0: i32, %arg1: i32) -> (i32, i32) {
    %c0_i32 = arith.constant 0 : i32
    return %arg0, %arg1 : i32, i32
  }
}

</mosaic_0001>

<llo_original>
// kernel: tpu_custom_call.1
$region0: #{tpu_custom_call.1}
  #allocation0 [shape = 'u32[]', space=smem, size = 0x4, offset = 0x4, fixed_abs, tag = 'smem constant byte address 0x4 - core index']
  #allocation1 [shape = 'u32[144,128]{1,0:T(1,128)}', space=vmem, size = 0x12000, scoped, tag = 'internal scratch']
  %s0 = inlined_call_operand.hbm [shape: bf16[16,32], index: 0, kind: input, shape index: {}]
  %s1 = inlined_call_operand.hbm [shape: bf16[32,128], index: 1, kind: input, shape index: {}]
  %s2 = inlined_call_operand.hbm [shape: f32[1,128], index: 2, kind: input, shape index: {}]
  %s3 = inlined_call_operand.hbm [shape: f32[16,128], index: 3, kind: output, shape index: {}]
  %s4 = sld [smem:[#allocation0]]
  $region34: #{tpu_custom_call.1} parent=0
    _
  %s6 = ssub.s32 1, %s4
  %s7 = scalar_select 0, %s6, %s4
  $region1: #{tpu_custom_call.1} parent=0
    #allocation2 [shape = 'u8[4096]{0}', space=vmem, size = 0x1000, scoped, tag = 'input window, operand 0, single buffered']
    #allocation3 [shape = 's32[1]{0}', space=sflag, size = 0x4, scoped, tag = 'scoped memory for tpu_custom_call.1']
    #allocation4 [shape = 's32[1]{0}', space=sflag, size = 0x4, scoped, tag = 'scoped memory for tpu_custom_call.1']
    #allocation5 [shape = 'u8[8192]{0}', space=vmem, size = 0x2000, scoped, tag = 'input window, operand 1, single buffered']
    #allocation6 [shape = 's32[1]{0}', space=sflag, size = 0x4, scoped, tag = 'scoped memory for tpu_custom_call.1']
    #allocation7 [shape = 'u8[512]{0}', space=vmem, size = 0x400, scoped, tag = 'input window, operand 2, single buffered']
    #allocation8 [shape = 'u8[8192]{0}', space=vmem, size = 0x2000, scoped, tag = 'output window, operand 0, single buffered']
    %8 = vsyncpa [#allocation3], 0
    %9 = vsyncpa [#allocation6], 0
    %10 = vsyncpa [#allocation4], 0
    // Predicated region
    $region2: #{tpu_custom_call.1} parent=1 // pred_check
      _
    $region3: #{tpu_custom_call.1} parent=1 // pred_check_branch
      %12 = sbr.rel (0) target = $region5
    $region4: #{tpu_custom_call.1} parent=1 // pred_region
      %s14 = ssub.s32 128, 128
      %15 = vsyncadd [#allocation3], %s14
      %s16 = sshll.u32 [#allocation2], 4
      %s17 = int_to_ptr.vmem [resolvable:$true] %s16
      %22 = dma.hbm_to_vmem [thread:$0]  %s0, 128, %s17, [#allocation3], 64, 64, 4
    $region5: #{tpu_custom_call.1} parent=1 // pred_fallthru
      _
    // Predicated region
    $region6: #{tpu_custom_call.1} parent=1 // pred_check
      _
    $region7: #{tpu_custom_call.1} parent=1 // pred_check_branch
      %24 = sbr.rel (0) target = $region9
    $region8: #{tpu_custom_call.1} parent=1 // pred_region
      %s26 = ssub.s32 256, 256
      %27 = vsyncadd [#allocation6], %s26
      %s28 = sshll.u32 [#allocation5], 4
      %s29 = int_to_ptr.vmem [resolvable:$true] %s28
      %34 = dma.hbm_to_vmem [thread:$0]  %s1, 256, %s29, [#allocation6], 64, 64, 4
    $region9: #{tpu_custom_call.1} parent=1 // pred_fallthru
      _
    // Predicated region
    $region10: #{tpu_custom_call.1} parent=1 // pred_check
      _
    $region11: #{tpu_custom_call.1} parent=1 // pred_check_branch
      %36 = sbr.rel (0) target = $region13
    $region12: #{tpu_custom_call.1} parent=1 // pred_region
      %s38 = ssub.s32 16, 16
      %39 = vsyncadd [#allocation6], %s38
      %s41 = sshll.u32 [#allocation7], 4
      %s42 = int_to_ptr.vmem [resolvable:$true] %s41
      %44 = dma.hbm_to_vmem [thread:$0]  %s2, 16, %s42, [#allocation6]
    $region13: #{tpu_custom_call.1} parent=1 // pred_fallthru
      _
    // Predicated region
    $region14: #{tpu_custom_call.1} parent=1 // pred_check
      _
    $region15: #{tpu_custom_call.1} parent=1 // pred_check_branch
      %46 = sbr.rel (0) target = $region17
    $region16: #{tpu_custom_call.1} parent=1 // pred_region
      %47 = dma.done [#allocation3], 128
    $region17: #{tpu_custom_call.1} parent=1 // pred_fallthru
      _
    // Predicated region
    $region18: #{tpu_custom_call.1} parent=1 // pred_check
      _
    $region19: #{tpu_custom_call.1} parent=1 // pred_check_branch
      %49 = sbr.rel (0) target = $region21
    $region20: #{tpu_custom_call.1} parent=1 // pred_region
      %50 = dma.done [#allocation6], 256
    $region21: #{tpu_custom_call.1} parent=1 // pred_fallthru
      _
    // Predicated region
    $region22: #{tpu_custom_call.1} parent=1 // pred_check
      _
    $region23: #{tpu_custom_call.1} parent=1 // pred_check_branch
      %52 = sbr.rel (0) target = $region25
    $region24: #{tpu_custom_call.1} parent=1 // pred_region
      %53 = dma.done [#allocation6], 16
    $region25: #{tpu_custom_call.1} parent=1 // pred_fallthru
      _
    %v55 = vld [vmem:[#allocation2] sm:$0xf]
    %v56 = vld [vmem:[#allocation2 + $0x4] sm:$0xf]
    %v57 = vld [vmem:[#allocation5] sm:$0xf]
    %v58 = vld [vmem:[#allocation5 + $0x4] sm:$0xf]
    %v59 = vld [vmem:[#allocation5 + $0x8] sm:$0xf]
    %v60 = vld [vmem:[#allocation5 + $0xc] sm:$0xf]
    %v61 = vld [vmem:[#allocation7] sm:$0x1]
    %v63 = vlaneseq
    %v64 = vshrl.u32 %v63, 7
    %v65 = vsub.s32 0, %v64
    %v66 = vrot.slane %v61, %v65
    %v70 = vunpack.c.l.b16 %v55
    %v71 = vunpack.c.l.b16 %v56
    %v72 = vpack.c.b16 %v71, %v70
    %v77 = vunpack.c.l.b16 %v57
    %v78 = vunpack.c.l.b16 %v58
    %v79 = vunpack.c.l.b16 %v59
    %v80 = vunpack.c.l.b16 %v60
    %v81 = vpack.c.b16 %v78, %v77
    %v82 = vpack.c.b16 %v80, %v79
    %vm85 = vcmask 261120
    %v87 = vsel %vm85, %v72, 0
    %89 = vmatprep.subr.bf16.mxu0 0
    %90 = vmatpush1.bf16.msra.mxu0 %v81
    %91 = vmatprep.subr.bf16.mxu0 0
    %92 = vmatpush1.bf16.msra.mxu0 %v82
    %93 = vmatprep.subr.bf16.mxu0 0
    %94 = vmatpush1.bf16.msra.mxu0 0
    %95 = vmatprep.subr.bf16.mxu0 0
    %96 = vmatpush1.bf16.msra.mxu0 0
    %97 = vmatprep.subr.bf16.mxu0 0
    %98 = vmatpush1.bf16.msra.mxu0 0
    %99 = vmatprep.subr.bf16.mxu0 0
    %100 = vmatpush1.bf16.msra.mxu0 0
    %101 = vmatprep.subr.bf16.mxu0 0
    %102 = vmatpush1.bf16.msra.mxu0 0
    %103 = vmatprep.subr.bf16.mxu0 0
    %104 = vmatpush1.bf16.msra.mxu0 0
    %105 = vmatprep.subr.bf16.mxu0 0
    %106 = vmatpush1.bf16.msra.mxu0 0
    %107 = vmatprep.subr.bf16.mxu0 0
    %108 = vmatpush1.bf16.msra.mxu0 0
    %109 = vmatprep.subr.bf16.mxu0 0
    %110 = vmatpush1.bf16.msra.mxu0 0
    %111 = vmatprep.subr.bf16.mxu0 0
    %112 = vmatpush1.bf16.msra.mxu0 0
    %113 = vmatprep.subr.bf16.mxu0 0
    %114 = vmatpush1.bf16.msra.mxu0 0
    %115 = vmatprep.subr.bf16.mxu0 0
    %116 = vmatpush1.bf16.msra.mxu0 0
    %117 = vmatprep.subr.bf16.mxu0 0
    %118 = vmatpush1.bf16.msra.mxu0 0
    %119 = vmatprep.subr.bf16.mxu0 0
    %120 = vmatpush1.bf16.msra.mxu0 0
    %121 = vmatprep.mubr.bf16.mxu0 0
    %122 = vmatmul.mubr.bf16.gmra.mrb[0].mxu0 %v87
    %v123 = vpop.f32.mrb[0].mxu0
    %v124 = vadd.f32 %v66, %v123
    %v125 = vpop.f32.mrb[0].mxu0
    %v126 = vpop.f32.mrb[0].mxu0
    %v127 = vadd.f32 %v66, %v126
    %v128 = vpop.f32.mrb[0].mxu0
    %129 = vdwg.mxu0
    %130 = vst [vmem:[#allocation8] sm:$0xff] %v124
    %131 = vst [vmem:[#allocation8 + $0x8] sm:$0xff] %v127
    // Predicated region
    $region26: #{tpu_custom_call.1} parent=1 // pred_check
      _
    $region27: #{tpu_custom_call.1} parent=1 // pred_check_branch
      %133 = sbr.rel (0) target = $region29
    $region28: #{tpu_custom_call.1} parent=1 // pred_region
      %s135 = ssub.s32 256, 256
      %136 = vsyncadd [#allocation4], %s135
      %s137 = sshll.u32 [#allocation8], 4
      %s138 = int_to_ptr.vmem [resolvable:$true] %s137
      %143 = dma.vmem_to_hbm [thread:$0]  %s138, 256, %s3, [#allocation4], 128, 128, 8
    $region29: #{tpu_custom_call.1} parent=1 // pred_fallthru
      _
    // Predicated region
    $region30: #{tpu_custom_call.1} parent=1 // pred_check
      _
    $region31: #{tpu_custom_call.1} parent=1 // pred_check_branch
      %145 = sbr.rel (0) target = $region33
    $region32: #{tpu_custom_call.1} parent=1 // pred_region
      %146 = dma.done [#allocation4], 256
    $region33: #{tpu_custom_call.1} parent=1 // pred_fallthru
      _
    %147 = vsyncpa [#allocation3], 1
    %148 = vsyncpa [#allocation6], 1
    %149 = vsyncpa [#allocation4], 1

</llo_original>
